<compile_context>
chip_gen: v6e
topology: v6e:2x2x1
jax: 0.10.0
libtpu: 0.0.40
codegen_flags: <defaults>
</compile_context>

<pallas_src>
import functools

import jax
import jax.numpy as jnp
from jax.experimental import pallas as pl
from jax.experimental.pallas import tpu as pltpu


def _round_up(x, m):
    return (x + m - 1) // m * m


# ---------------------------------------------------------------------------
# Kernel 1: normalize centers (class-on-lanes layout) + cluster-variance reg.
# ---------------------------------------------------------------------------
def _prep_kernel(fc_ref, wn_ref, reg_ref, *, n_class, n_center, use_reg):
    C, K = n_class, n_center
    w = fc_ref[...].astype(jnp.float32)                    # (K*C, D), row = k*C + c

    # F.normalize(fc, p=2, dim=1) via rsqrt (EUP) instead of sqrt->divide.
    sumsq = jnp.sum(w * w, axis=1, keepdims=True)
    wn = w * jax.lax.rsqrt(jnp.maximum(sumsq, jnp.float32(1e-24)))
    wn_ref[...] = wn

    if use_reg:
        # One gram matmul over all centers (contract D, no explicit .T).
        gram = jax.lax.dot_general(
            wn, wn, dimension_numbers=(((1,), (1,)), ((), ())),
            preferred_element_type=jnp.float32)            # (K*C, K*C)
        kc = K * C
        row = jax.lax.broadcasted_iota(jnp.int32, (kc, kc), 0)
        col = jax.lax.broadcasted_iota(jnp.int32, (kc, kc), 1)
        # Same class (row % C == col % C) and strictly-upper within the class
        # (col > row <=> k2 > k1 in the reordered layout).
        mask = jnp.logical_and((row % C) == (col % C), col > row)
        mask = mask.astype(jnp.float32)
        sub = 1.0 - gram
        sub = jnp.where(sub <= 0.0, jnp.float32(1e-10), sub)
        reg = jnp.sum(jnp.sqrt(2.0 * sub) * mask) / (C * K * (K - 1.0))
        reg_ref[0, 0] = reg
    else:
        reg_ref[0, 0] = jnp.float32(0.0)


# ---------------------------------------------------------------------------
# Kernel 2: N-tiled classification loss (partial sums per tile).
# ---------------------------------------------------------------------------
def _batch_kernel(emb_ref, lab_ref, wn_ref, out_ref, *,
                  n_class, n_center, lmd, inv_gamma, margin, n_valid, tile_n):
    C, K = n_class, n_center
    emb = emb_ref[...]                                     # (T, D), input dtype
    wn = wn_ref[...].astype(emb.dtype)                     # (K*C, D), tiny cast

    # F.linear(embedding, wn): contract D directly (no wn.T materialization).
    logits = jax.lax.dot_general(
        emb, wn, dimension_numbers=(((1,), (1,)), ((), ())),
        preferred_element_type=jnp.float32)                # (T, K*C) f32

    ig = jnp.float32(inv_gamma)

    # Per-class softmax over the K centers, expressed as K elementwise passes
    # over lane-dense (T, C) slabs (class-on-lanes layout: column = k*C + c).
    m = ig * logits[:, 0:C]
    for k in range(1, K):
        m = jnp.maximum(m, ig * logits[:, k * C:(k + 1) * C])
    denom = jnp.zeros((tile_n, C), jnp.float32)
    num = jnp.zeros((tile_n, C), jnp.float32)
    for k in range(K):
        xk = logits[:, k * C:(k + 1) * C]
        ek = jnp.exp(ig * xk - m)
        denom = denom + ek
        num = num + ek * xk
    h = num * pl.reciprocal(denom, approx=False)           # (T, C)

    # One-hot built in-kernel from int32 labels (VPU compare, no dense DMA).
    labels = lab_ref[...]                                  # (T, 1) int32
    cls_iota = jax.lax.broadcasted_iota(jnp.int32, (tile_n, C), 1)
    onehot = (cls_iota == labels).astype(jnp.float32)      # (T, C)

    # Margin-adjusted scaled cross-entropy (stable log-sum-exp).
    h2 = jnp.float32(lmd) * (h - jnp.float32(margin) * onehot)
    mx = jnp.max(h2, axis=1, keepdims=True)
    lse = jnp.log(jnp.sum(jnp.exp(h2 - mx), axis=1, keepdims=True)) + mx
    tgt = jnp.sum(onehot * h2, axis=1, keepdims=True)
    per_row = lse - tgt                                    # (T, 1)

    # Mask padded rows (batch padded up to a multiple of tile_n).
    row_iota = jax.lax.broadcasted_iota(jnp.int32, (tile_n, 1), 0)
    global_row = row_iota + pl.program_id(0) * tile_n
    per_row = jnp.where(global_row < n_valid, per_row, jnp.float32(0.0))

    # Per-tile partial sum; mean is finished in the wrapper.
    out_ref[...] = jnp.sum(per_row, axis=0, keepdims=True).reshape(1, 1, 1)


# ---------------------------------------------------------------------------
# Wrapper
# ---------------------------------------------------------------------------
def soft_triple_loss2(embeddings, fc, labels, *,
                      n_class=4, n_center=3, lmd=10.0, gamma=0.1,
                      tau=0.2, margin=0.01, tile_n=None):
    """Pallas implementation of SoftTripleLoss2.forward."""
    N, D = embeddings.shape
    C, K = int(n_class), int(n_center)
    assert fc.shape == (C * K, D)
    use_reg = (float(tau) > 0.0) and (K > 1)

    labels = labels.reshape(-1).astype(jnp.int32)

    # Class-on-lanes reorder of the centers: original row c*K + k -> k*C + c.
    fc_r = fc.reshape(C, K, D).transpose(1, 0, 2).reshape(K * C, D)

    # --- prep kernel: normalized centers + regularizer (runs once) ----------
    wn, reg = pl.pallas_call(
        functools.partial(_prep_kernel, n_class=C, n_center=K, use_reg=use_reg),
        out_shape=(jax.ShapeDtypeStruct((K * C, D), jnp.float32),
                   jax.ShapeDtypeStruct((1, 1), jnp.float32)),
        in_specs=[pl.BlockSpec(memory_space=pltpu.MemorySpace.VMEM)],
        out_specs=(pl.BlockSpec(memory_space=pltpu.MemorySpace.VMEM),
                   pl.BlockSpec(memory_space=pltpu.MemorySpace.SMEM)),
    )(fc_r)

    # --- batch kernel: N-tiled, pipelined, megacore-parallel -----------------
    # Keep each embedding tile ~<= 4 MiB so double-buffered inputs fit easily
    # under v7x's smaller scoped-VMEM budget as well as v5e/v6e.
    if tile_n is None:
        bytes_per_row = D * embeddings.dtype.itemsize
        tile_n = max(8, min(1024,
                            (4 * 1024 * 1024 // max(bytes_per_row, 1)) // 8 * 8))
    tile_n = max(8, _round_up(int(tile_n), 8))
    tile_n = min(tile_n, _round_up(N, 8))
    n_pad = _round_up(N, tile_n)
    num_tiles = n_pad // tile_n

    emb_p = embeddings if n_pad == N else jnp.pad(
        embeddings, ((0, n_pad - N), (0, 0)))
    lab2 = labels.reshape(-1, 1)
    lab_p = lab2 if n_pad == N else jnp.pad(lab2, ((0, n_pad - N), (0, 0)))

    kernel = functools.partial(
        _batch_kernel, n_class=C, n_center=K, lmd=float(lmd),
        inv_gamma=1.0 / float(gamma), margin=float(margin),
        n_valid=int(N), tile_n=int(tile_n))

    partial_sums = pl.pallas_call(
        kernel,
        grid=(num_tiles,),
        out_shape=jax.ShapeDtypeStruct((num_tiles, 1, 1), jnp.float32),
        in_specs=[
            pl.BlockSpec((tile_n, D), lambda i: (i, 0)),      # embeddings tile
            pl.BlockSpec((tile_n, 1), lambda i: (i, 0)),      # int32 labels tile
            pl.BlockSpec((K * C, D), lambda i: (0, 0)),       # resident wn
        ],
        out_specs=pl.BlockSpec((1, 1, 1), lambda i: (i, 0, 0)),
        compiler_params=pltpu.CompilerParams(
            dimension_semantics=("parallel",),
            vmem_limit_bytes=48 * 1024 * 1024),
    )(emb_p, lab_p, wn)

    loss_cls = jnp.sum(partial_sums) / jnp.float32(N)
    if use_reg:
        return loss_cls + jnp.float32(tau) * reg[0, 0]
    return loss_cls


# ---------------------------------------------------------------------------
# Pure-JAX reference mirroring the PyTorch module (original layout).
# ---------------------------------------------------------------------------
def _reference_loss(embeddings, fc, labels, *, n_class, n_center, lmd, gamma,
                    tau, margin):
    inv_gamma = 1.0 / gamma
    norm = jnp.sqrt(jnp.sum(fc * fc, axis=1, keepdims=True))
    wn = fc / jnp.maximum(norm, 1e-12)
    x = (embeddings @ wn.T).reshape(-1, n_class, n_center)
    prob = jax.nn.softmax(inv_gamma * x, axis=2)
    h = jnp.sum(prob * x, axis=2)
    onehot = jax.nn.one_hot(labels, n_class, dtype=jnp.float32)
    h2 = lmd * (h - margin * onehot)
    logp = jax.nn.log_softmax(h2, axis=1)
    loss_cls = -jnp.mean(jnp.sum(onehot * logp, axis=1))
    if tau > 0 and n_center > 1:
        reg = 0.0
        for i in range(n_class):
            w_sub = wn[i * n_center:(i + 1) * n_center]
            sub = 1.0 - w_sub @ w_sub.T
            sub = jnp.where(sub <= 0.0, 1e-10, sub)
            mask = jnp.triu(jnp.ones((n_center, n_center)), k=1)
            reg += jnp.sum(jnp.sqrt(2.0 * sub) * mask)
        reg /= n_class * n_center * (n_center - 1.0)
        return loss_cls + tau * reg
    return loss_cls


if __name__ == "__main__":
    n_class, n_center = 4, 3
    lmd, gamma, tau, margin = 10.0, 0.1, 0.2, 0.01

    key = jax.random.PRNGKey(0)
    k_emb, k_fc, k_lab, k_emb2, k_lab2 = jax.random.split(key, 5)

    # --- check 1: tiny shapes, single tile -----------------------------------
    N, D = 8, 32
    embeddings = jax.random.normal(k_emb, (N, D), dtype=jnp.float32)
    bound = 1.0 / jnp.sqrt(jnp.float32(D))
    fc = jax.random.uniform(k_fc, (n_class * n_center, D),
                            minval=-bound, maxval=bound, dtype=jnp.float32)
    labels = jax.random.randint(k_lab, (N,), 0, n_class, dtype=jnp.int32)

    loss = jax.block_until_ready(
        soft_triple_loss2(embeddings, fc, labels,
                          n_class=n_class, n_center=n_center,
                          lmd=lmd, gamma=gamma, tau=tau, margin=margin))
    ref = jax.block_until_ready(
        _reference_loss(embeddings, fc, labels,
                        n_class=n_class, n_center=n_center,
                        lmd=lmd, gamma=gamma, tau=tau, margin=margin))
    assert jnp.allclose(loss, ref, rtol=1e-4, atol=1e-5), (loss, ref)

    # --- check 2: multiple tiles + batch padding -----------------------------
    N2 = 40
    embeddings2 = jax.random.normal(k_emb2, (N2, D), dtype=jnp.float32)
    labels2 = jax.random.randint(k_lab2, (N2,), 0, n_class, dtype=jnp.int32)
    loss2 = jax.block_until_ready(
        soft_triple_loss2(embeddings2, fc, labels2,
                          n_class=n_class, n_center=n_center,
                          lmd=lmd, gamma=gamma, tau=tau, margin=margin,
                          tile_n=16))
    ref2 = jax.block_until_ready(
        _reference_loss(embeddings2, fc, labels2,
                        n_class=n_class, n_center=n_center,
                        lmd=lmd, gamma=gamma, tau=tau, margin=margin))
    assert jnp.allclose(loss2, ref2, rtol=1e-4, atol=1e-5), (loss2, ref2)

    # --- check 3: no-regularizer branch (tau = 0) ----------------------------
    loss3 = jax.block_until_ready(
        soft_triple_loss2(embeddings, fc, labels,
                          n_class=n_class, n_center=n_center,
                          lmd=lmd, gamma=gamma, tau=0.0, margin=margin))
    ref3 = jax.block_until_ready(
        _reference_loss(embeddings, fc, labels,
                        n_class=n_class, n_center=n_center,
                        lmd=lmd, gamma=gamma, tau=0.0, margin=margin))
    assert jnp.allclose(loss3, ref3, rtol=1e-4, atol=1e-5), (loss3, ref3)

    print("KERNEL_OK")
</pallas_src>

<mosaic_0001>
module attributes {stable_mosaic.version = 11 : i64} {
  func.func @_prep_kernel(%arg0: memref<12x32xf32, #tpu.memory_space<vmem>>, %arg1: memref<12x32xf32, #tpu.memory_space<vmem>>, %arg2: memref<1x1xf32, #tpu.memory_space<smem>>) attributes {dimension_semantics = [], scalar_prefetch = 0 : i64, scratch_operands = 0 : i64, tpu.core_type = #tpu.core_type<tc>} {
    %c0 = arith.constant 0 : index
    %c0_0 = arith.constant 0 : index
    %0 = vector.load %arg0[%c0, %c0_0] : memref<12x32xf32, #tpu.memory_space<vmem>>, vector<12x32xf32>
    %1 = arith.mulf %0, %0 : vector<12x32xf32>
    %cst = arith.constant dense<0.000000e+00> : vector<12xf32>
    %2 = vector.multi_reduction <add>, %1, %cst [1] : vector<12x32xf32> to vector<12xf32>
    %3 = vector.shape_cast %2 : vector<12xf32> to vector<12x1xf32>
    %cst_1 = arith.constant 1.000000e-24 : f32
    %4 = vector.broadcast %cst_1 : f32 to vector<12x1xf32>
    %5 = arith.maximumf %3, %4 : vector<12x1xf32>
    %6 = math.rsqrt %5 : vector<12x1xf32>
    %7 = vector.broadcast %6 : vector<12x1xf32> to vector<12x32xf32>
    %8 = arith.mulf %0, %7 : vector<12x32xf32>
    %c0_2 = arith.constant 0 : index
    %c0_3 = arith.constant 0 : index
    %9 = vector.load %arg1[%c0_2, %c0_3] : memref<12x32xf32, #tpu.memory_space<vmem>>, vector<12x32xf32>
    tpu.vector_store %arg1[%c0_2, %c0_3], %8 {strides = array<i32>} : memref<12x32xf32, #tpu.memory_space<vmem>>, vector<12x32xf32>,
    %cst_4 = arith.constant dense<0.000000e+00> : vector<12x12xf32>
    %10 = tpu.matmul %8, %8, %cst_4 {dimension_numbers = #tpu.dot_dimension_numbers<[1], [1], [0], [0], [0, 0, 1, 0], [], []>} : vector<12x32xf32>, vector<12x32xf32>, vector<12x12xf32> -> vector<12x12xf32>
    %11 = tpu.iota {dimensions = array<i32: 0>} : vector<12x12xi32>
    %12 = tpu.iota {dimensions = array<i32: 1>} : vector<12x12xi32>
    %c4_i32 = arith.constant 4 : i32
    %c0_i32 = arith.constant 0 : i32
    %13 = arith.cmpi eq, %c4_i32, %c0_i32 : i32
    %c1_i32 = arith.constant 1 : i32
    %14 = arith.select %13, %c1_i32, %c4_i32 : i32
    %15 = vector.broadcast %14 : i32 to vector<12x12xi32>
    %16 = arith.remsi %11, %15 : vector<12x12xi32>
    %c0_i32_5 = arith.constant 0 : i32
    %17 = vector.broadcast %c0_i32_5 : i32 to vector<12x12xi32>
    %18 = arith.cmpi ne, %16, %17 : vector<12x12xi32>
    %c0_i32_6 = arith.constant 0 : i32
    %19 = vector.broadcast %c0_i32_6 : i32 to vector<12x12xi32>
    %20 = arith.cmpi slt, %16, %19 : vector<12x12xi32>
    %c0_i32_7 = arith.constant 0 : i32
    %21 = arith.cmpi slt, %14, %c0_i32_7 : i32
    %22 = vector.broadcast %21 : i1 to vector<12x12xi1>
    %23 = vector.broadcast %22 : vector<12x12xi1> to vector<12x12xi1>
    %24 = arith.xori %20, %23 : vector<12x12xi1>
    %25 = arith.andi %24, %18 : vector<12x12xi1>
    %26 = vector.broadcast %14 : i32 to vector<12x12xi32>
    %27 = arith.addi %16, %26 : vector<12x12xi32>
    %28 = arith.select %25, %27, %16 : vector<12x12xi1>, vector<12x12xi32>
    %c4_i32_8 = arith.constant 4 : i32
    %c0_i32_9 = arith.constant 0 : i32
    %29 = arith.cmpi eq, %c4_i32_8, %c0_i32_9 : i32
    %c1_i32_10 = arith.constant 1 : i32
    %30 = arith.select %29, %c1_i32_10, %c4_i32_8 : i32
    %31 = vector.broadcast %30 : i32 to vector<12x12xi32>
    %32 = arith.remsi %12, %31 : vector<12x12xi32>
    %c0_i32_11 = arith.constant 0 : i32
    %33 = vector.broadcast %c0_i32_11 : i32 to vector<12x12xi32>
    %34 = arith.cmpi ne, %32, %33 : vector<12x12xi32>
    %c0_i32_12 = arith.constant 0 : i32
    %35 = vector.broadcast %c0_i32_12 : i32 to vector<12x12xi32>
    %36 = arith.cmpi slt, %32, %35 : vector<12x12xi32>
    %c0_i32_13 = arith.constant 0 : i32
    %37 = arith.cmpi slt, %30, %c0_i32_13 : i32
    %38 = vector.broadcast %37 : i1 to vector<12x12xi1>
    %39 = vector.broadcast %38 : vector<12x12xi1> to vector<12x12xi1>
    %40 = arith.xori %36, %39 : vector<12x12xi1>
    %41 = arith.andi %40, %34 : vector<12x12xi1>
    %42 = vector.broadcast %30 : i32 to vector<12x12xi32>
    %43 = arith.addi %32, %42 : vector<12x12xi32>
    %44 = arith.select %41, %43, %32 : vector<12x12xi1>, vector<12x12xi32>
    %45 = arith.cmpi eq, %28, %44 : vector<12x12xi32>
    %46 = arith.cmpi sgt, %12, %11 : vector<12x12xi32>
    %47 = arith.andi %45, %46 : vector<12x12xi1>
    %48 = arith.extui %47 : vector<12x12xi1> to vector<12x12xi32>
    %49 = arith.sitofp %48 : vector<12x12xi32> to vector<12x12xf32>
    %cst_14 = arith.constant 1.000000e+00 : f32
    %50 = vector.broadcast %cst_14 : f32 to vector<12x12xf32>
    %51 = arith.subf %50, %10 : vector<12x12xf32>
    %cst_15 = arith.constant 0.000000e+00 : f32
    %52 = vector.broadcast %cst_15 : f32 to vector<12x12xf32>
    %53 = arith.cmpf ole, %51, %52 : vector<12x12xf32>
    %cst_16 = arith.constant 1.000000e-10 : f32
    %54 = vector.broadcast %cst_16 : f32 to vector<12x12xf32>
    %55 = arith.select %53, %54, %51 : vector<12x12xi1>, vector<12x12xf32>
    %cst_17 = arith.constant 2.000000e+00 : f32
    %56 = vector.broadcast %cst_17 : f32 to vector<12x12xf32>
    %57 = arith.mulf %56, %55 : vector<12x12xf32>
    %58 = math.sqrt %57 : vector<12x12xf32>
    %59 = arith.mulf %58, %49 : vector<12x12xf32>
    %60 = vector.shape_cast %59 : vector<12x12xf32> to vector<1x12x12xf32>
    %cst_18 = arith.constant dense<0.000000e+00> : vector<1xf32>
    %61 = vector.multi_reduction <add>, %60, %cst_18 [1, 2] : vector<1x12x12xf32> to vector<1xf32>
    %62 = vector.shape_cast %61 : vector<1xf32> to vector<1x1x1xf32>
    %63 = vector.extract %62[0, 0, 0] : f32 from vector<1x1x1xf32>
    %cst_19 = arith.constant 2.400000e+01 : f32
    %64 = arith.divf %63, %cst_19 : f32
    %c0_20 = arith.constant 0 : index
    %c0_21 = arith.constant 0 : index
    %65 = memref.load %arg2[%c0_20, %c0_21] : memref<1x1xf32, #tpu.memory_space<smem>>
    memref.store %64, %arg2[%c0_20, %c0_21] : memref<1x1xf32, #tpu.memory_space<smem>>
    return
  }
}

</mosaic_0001>

<llo_original>
// kernel: tpu_custom_call.1
$region0: #{tpu_custom_call.1}
  #allocation0 [shape = 'u32[]', space=smem, size = 0x4, offset = 0x4, fixed_abs, tag = 'smem constant byte address 0x4 - core index']
  #allocation1 [shape = 'u32[144,128]{1,0:T(1,128)}', space=vmem, size = 0x12000, scoped, tag = 'internal scratch']
  %s0 = inlined_call_operand.hbm [shape: f32[12,32], index: 0, kind: input, shape index: {}]
  %s1 = inlined_call_operand.hbm [shape: f32[12,32], index: 1, kind: output, shape index: {0}]
  %s2 = inlined_call_operand.hbm [shape: f32[1,1], index: 2, kind: output, shape index: {1}]
  %3 = xla_tuple %s1, %s2
  %s4 = sld [smem:[#allocation0]]
  $region26: #{tpu_custom_call.1} parent=0
    _
  %s6 = ssub.s32 1, %s4
  %s7 = scalar_select 0, %s6, %s4
  $region1: #{tpu_custom_call.1} parent=0
    #allocation2 [shape = 'u8[8192]{0}', space=vmem, size = 0x2000, scoped, tag = 'input window, operand 0, single buffered']
    #allocation3 [shape = 's32[1]{0}', space=sflag, size = 0x4, scoped, tag = 'scoped memory for tpu_custom_call.1']
    #allocation4 [shape = 's32[1]{0}', space=sflag, size = 0x4, scoped, tag = 'scoped memory for tpu_custom_call.1']
    #allocation5 [shape = 's32[1]{0}', space=sflag, size = 0x4, scoped, tag = 'scoped memory for tpu_custom_call.1']
    #allocation6 [shape = 'u8[8192]{0}', space=vmem, size = 0x2000, scoped, tag = 'output window, operand 0, single buffered']
    #allocation7 [shape = 'u8[512]{0}', space=smem, size = 0x200, scoped, tag = 'output window, operand 1, single buffered']
    %8 = vsyncpa [#allocation3], 0
    %9 = vsyncpa [#allocation4], 0
    %10 = vsyncpa [#allocation5], 0
    // Predicated region
    $region2: #{tpu_custom_call.1} parent=1 // pred_check
      _
    $region3: #{tpu_custom_call.1} parent=1 // pred_check_branch
      %12 = sbr.rel (0) target = $region5
    $region4: #{tpu_custom_call.1} parent=1 // pred_region
      %s14 = ssub.s32 256, 256
      %15 = vsyncadd [#allocation3], %s14
      %s16 = sshll.u32 [#allocation2], 4
      %s17 = int_to_ptr.vmem [resolvable:$true] %s16
      %22 = dma.hbm_to_vmem [thread:$0]  %s0, 256, %s17, [#allocation3], 128, 128, 8
    $region5: #{tpu_custom_call.1} parent=1 // pred_fallthru
      _
    // Predicated region
    $region6: #{tpu_custom_call.1} parent=1 // pred_check
      _
    $region7: #{tpu_custom_call.1} parent=1 // pred_check_branch
      %24 = sbr.rel (0) target = $region9
    $region8: #{tpu_custom_call.1} parent=1 // pred_region
      %25 = dma.done [#allocation3], 256
    $region9: #{tpu_custom_call.1} parent=1 // pred_fallthru
      _
    %v26 = vld [vmem:[#allocation2] sm:$0xff]
    %v27 = vld [vmem:[#allocation2 + $0x8] sm:$0xf]
    %v28 = vmul.f32 %v26, %v26
    %v29 = vmul.f32 %v27, %v27
    %vm30 = vcmask 261120
    %v31 = vsel %vm30, %v28, 0.0
    %32 = vadd.xlane.f32.xlu0 %v31
    %v33 = vpop.xlane.xlu0 %32
    %vm34 = vcmask 257024
    %v35 = vsel %vm34, %v29, 0.0
    %36 = vadd.xlane.f32.xlu0 %v35
    %v37 = vpop.xlane.xlu0 %36
    %v38 = vmax.f32 %v33, 1e-24
    %v39 = vmax.f32 %v37, 1e-24
    %v40 = vrsqrt.pop %v38
    %v41 = vrsqrt.pop %v39
    %v42 = vmul.f32 %v26, %v40
    %v43 = vmul.f32 %v27, %v41
    %44 = vst.msk [vmem:[#allocation6] sm:$0xff] %vm30, %v42
    %45 = vst.msk [vmem:[#allocation6 + $0x8] sm:$0xf] %vm34, %v43
    %v47 = vsel %vm30, %v42, 0
    %v50 = vsel %vm30, %v43, 0
    %52 = vmatprep.subr.mxu0 0.0
    %53 = vmatpush1.xpose.msra.mxu0 0.0
    %54 = vmatprep.subr.mxu0 0.0
    %55 = vmatpush1.xpose.msra.mxu0 0.0
    %56 = vmatprep.subr.mxu0 0.0
    %57 = vmatpush1.xpose.msra.mxu0 0.0
    %58 = vmatprep.subr.mxu0 0.0
    %59 = vmatpush1.xpose.msra.mxu0 0.0
    %60 = vmatprep.subr.mxu0 0.0
    %61 = vmatpush1.xpose.msra.mxu0 0.0
    %62 = vmatprep.subr.mxu0 0.0
    %63 = vmatpush1.xpose.msra.mxu0 0.0
    %64 = vmatprep.subr.mxu0 0.0
    %65 = vmatpush1.xpose.msra.mxu0 0.0
    %66 = vmatprep.subr.mxu0 0.0
    %67 = vmatpush1.xpose.msra.mxu0 0.0
    %68 = vmatprep.subr.mxu0 0.0
    %69 = vmatpush1.xpose.msra.mxu0 0.0
    %70 = vmatprep.subr.mxu0 0.0
    %71 = vmatpush1.xpose.msra.mxu0 0.0
    %72 = vmatprep.subr.mxu0 0.0
    %73 = vmatpush1.xpose.msra.mxu0 0.0
    %74 = vmatprep.subr.mxu0 0.0
    %75 = vmatpush1.xpose.msra.mxu0 0.0
    %76 = vmatprep.subr.mxu0 0.0
    %77 = vmatpush1.xpose.msra.mxu0 0.0
    %78 = vmatprep.subr.mxu0 0.0
    %79 = vmatpush1.xpose.msra.mxu0 0.0
    %80 = vmatprep.subr.mxu0 0.0
    %81 = vmatpush1.xpose.msra.mxu0 %v50
    %82 = vmatprep.subr.mxu0 0.0
    %83 = vmatpush1.xpose.msra.mxu0 %v47
    %84 = vmatprep.subr.mxu0 0.0
    %85 = vmatpush2.xpose.msra.mxu0 0.0
    %86 = vmatprep.subr.mxu0 0.0
    %87 = vmatpush2.xpose.msra.mxu0 0.0
    %88 = vmatprep.subr.mxu0 0.0
    %89 = vmatpush2.xpose.msra.mxu0 0.0
    %90 = vmatprep.subr.mxu0 0.0
    %91 = vmatpush2.xpose.msra.mxu0 0.0
    %92 = vmatprep.subr.mxu0 0.0
    %93 = vmatpush2.xpose.msra.mxu0 0.0
    %94 = vmatprep.subr.mxu0 0.0
    %95 = vmatpush2.xpose.msra.mxu0 0.0
    %96 = vmatprep.subr.mxu0 0.0
    %97 = vmatpush2.xpose.msra.mxu0 0.0
    %98 = vmatprep.subr.mxu0 0.0
    %99 = vmatpush2.xpose.msra.mxu0 0.0
    %100 = vmatprep.subr.mxu0 0.0
    %101 = vmatpush2.xpose.msra.mxu0 0.0
    %102 = vmatprep.subr.mxu0 0.0
    %103 = vmatpush2.xpose.msra.mxu0 0.0
    %104 = vmatprep.subr.mxu0 0.0
    %105 = vmatpush2.xpose.msra.mxu0 0.0
    %106 = vmatprep.subr.mxu0 0.0
    %107 = vmatpush2.xpose.msra.mxu0 0.0
    %108 = vmatprep.subr.mxu0 0.0
    %109 = vmatpush2.xpose.msra.mxu0 0.0
    %110 = vmatprep.subr.mxu0 0.0
    %111 = vmatpush2.xpose.msra.mxu0 0.0
    %112 = vmatprep.subr.mxu0 0.0
    %113 = vmatpush2.xpose.msra.mxu0 0.0
    %114 = vmatprep.subr.mxu0 0.0
    %115 = vmatpush2.xpose.msra.mxu0 0.0
    %116 = vmatprep.mubr.f32.mxu0 0.0
    %117 = vmatmul.mubr.f32.gmra.mxu0 %v47
    %v118 = vpop.f32.mrf.mxu0
    %v119 = vadd.f32 0.0, %v118
    %v120 = vpop.f32.mrf.mxu0
    %121 = vmatprep.mubr.f32.mxu0 0.0
    %122 = vmatmul.mubr.f32.gmra.mxu0 %v50
    %v123 = vpop.f32.mrf.mxu0
    %v124 = vadd.f32 0.0, %v123
    %v125 = vpop.f32.mrf.mxu0
    %126 = vdwg.mxu0
    %v127 = vlaneseq
    %v128 = vshrl.u32 %v127, 7
    %v129 = vadd.s32 %v128, 8
    %v130 = vlaneseq
    %v131 = vand.u32 %v130, 127
    %vm132 = vcmp.lt.s32.totalorder %v128, 0
    %v133 = vsub.s32 0, %v128
    %v134 = vsel %vm132, %v133, %v128
    %v135 = vshrl.u32 %v134, 2
    %v136 = vand.u32 %v134, 3
    %v137 = vsub.s32 0, %v136
    %v138 = vsel %vm132, %v137, %v136
    %vm139 = vcmp.lt.s32.totalorder %v129, 0
    %v140 = vsub.s32 0, %v129
    %v141 = vsel %vm139, %v140, %v129
    %v142 = vshrl.u32 %v141, 2
    %v143 = vand.u32 %v141, 3
    %v144 = vsub.s32 0, %v143
    %v145 = vsel %vm139, %v144, %v143
    %vm146 = vcmp.ne.s32.totalorder %v138, 0
    %vm147 = vcmp.ne.s32.totalorder %v145, 0
    %vm148 = vcmp.lt.s32.totalorder %v138, 0
    %vm149 = vcmp.lt.s32.totalorder %v145, 0
    %vm150 = vmand %vm148, %vm146
    %vm151 = vmand %vm149, %vm147
    %v152 = vadd.s32 %v138, 4
    %v153 = vadd.s32 %v145, 4
    %v154 = vsel %vm150, %v152, %v138
    %v155 = vsel %vm151, %v153, %v145
    %vm156 = vcmp.lt.s32.totalorder %v131, 0
    %v157 = vsub.s32 0, %v131
    %v158 = vsel %vm156, %v157, %v131
    %v159 = vshrl.u32 %v158, 2
    %v160 = vand.u32 %v158, 3
    %v161 = vsub.s32 0, %v160
    %v162 = vsel %vm156, %v161, %v160
    %vm163 = vcmp.ne.s32.totalorder %v162, 0
    %vm164 = vcmp.lt.s32.totalorder %v162, 0
    %vm165 = vmand %vm164, %vm163
    %v166 = vadd.s32 %v162, 4
    %v167 = vsel %vm165, %v166, %v162
    %vm168 = vcmp.eq.s32.totalorder %v154, %v167
    %vm169 = vcmp.eq.s32.totalorder %v155, %v167
    %vm170 = vcmp.gt.s32.totalorder %v131, %v128
    %vm171 = vcmp.gt.s32.totalorder %v131, %v129
    %vm172 = vmand %vm168, %vm170
    %vm173 = vmand %vm169, %vm171
    %v174 = vsel %vm172, 1, 0
    %v175 = vsel %vm173, 1, 0
    %v176 = vcvt.s32.f32 %v174
    %v177 = vcvt.s32.f32 %v175
    %v178 = vsub.f32 1.0, %v119
    %v179 = vsub.f32 1.0, %v124
    %vm180 = vcmp.le.f32.partialorder %v178, 0.0
    %vm181 = vcmp.le.f32.partialorder %v179, 0.0
    %v182 = vsel %vm180, 1e-10, %v178
    %v183 = vsel %vm181, 1e-10, %v179
    %v184 = vmul.f32 %v182, 2.0
    %v185 = vmul.f32 %v183, 2.0
    %v186 = vrsqrt.pop %v184
    %v187 = vmul.f32 %v184, %v186
    %vm188 = vcmp.eq.f32.partialorder %v184, inf
    %v189 = vsel %vm188, %v184, %v187
    %vm190 = vcmp.eq.f32.partialorder %v184, 0.0
    %v191 = vand.u32 %v184, 2147483648
    %v192 = vsel %vm190, %v191, %v189
    %v193 = vrsqrt.pop %v185
    %v194 = vmul.f32 %v185, %v193
    %vm195 = vcmp.eq.f32.partialorder %v185, inf
    %v196 = vsel %vm195, %v185, %v194
    %vm197 = vcmp.eq.f32.partialorder %v185, 0.0
    %v198 = vand.u32 %v185, 2147483648
    %v199 = vsel %vm197, %v198, %v196
    %v200 = vmul.f32 %v192, %v176
    %v201 = vmul.f32 %v199, %v177
    %vm202 = vcmask 97280
    %v203 = vsel %vm202, %v200, 0.0
    %vm204 = vcmask 93184
    %v205 = vsel %vm204, %v201, 0.0
    %v206 = vadd.f32 %v203, %v205
    %207 = vadd.xlane.f32.xlu0 %v206
    %v208 = vpop.xlane.xlu0 %207
    %v209 = vrot.slane %v208, 4
    %v210 = vadd.f32 %v208, %v209
    %v211 = vrot.slane %v210, 2
    %v212 = vadd.f32 %v210, %v211
    %v213 = vrot.slane %v212, 1
    %v214 = vadd.f32 %v212, %v213
    %s215 = vtos %v214
    %v216 = vrcp.pop 24.0
    %s217 = vtos %v216
    %s218 = smul.f32 %s215, %s217
    %s219 = scalar_lea.smem [#allocation7], 0
    %220 = sst [smem:[%s219]] %s218
    // Predicated region
    $region10: #{tpu_custom_call.1} parent=1 // pred_check
      _
    $region11: #{tpu_custom_call.1} parent=1 // pred_check_branch
      %222 = sbr.rel (0) target = $region13
    $region12: #{tpu_custom_call.1} parent=1 // pred_region
      %s224 = ssub.s32 256, 256
      %225 = vsyncadd [#allocation4], %s224
      %s226 = sshll.u32 [#allocation6], 4
      %s227 = int_to_ptr.vmem [resolvable:$true] %s226
      %232 = dma.vmem_to_hbm [thread:$0]  %s227, 256, %s1, [#allocation4], 128, 128, 8
    $region13: #{tpu_custom_call.1} parent=1 // pred_fallthru
      _
    // Predicated region
    $region14: #{tpu_custom_call.1} parent=1 // pred_check
      _
    $region15: #{tpu_custom_call.1} parent=1 // pred_check_branch
      %234 = sbr.rel (0) target = $region17
    $region16: #{tpu_custom_call.1} parent=1 // pred_region
      %s236 = ssub.s32 16, 16
      %237 = vsyncadd [#allocation5], %s236
      %240 = dma.smem_to_hbm [#allocation7], 16, %s2, [#allocation5]
    $region17: #{tpu_custom_call.1} parent=1 // pred_fallthru
      _
    // Predicated region
    $region18: #{tpu_custom_call.1} parent=1 // pred_check
      _
    $region19: #{tpu_custom_call.1} parent=1 // pred_check_branch
      %242 = sbr.rel (0) target = $region21
    $region20: #{tpu_custom_call.1} parent=1 // pred_region
      %243 = dma.done [#allocation4], 256
    $region21: #{tpu_custom_call.1} parent=1 // pred_fallthru
      _
    // Predicated region
    $region22: #{tpu_custom_call.1} parent=1 // pred_check
      _
    $region23: #{tpu_custom_call.1} parent=1 // pred_check_branch
      %245 = sbr.rel (0) target = $region25
    $region24: #{tpu_custom_call.1} parent=1 // pred_region
      %246 = dma.done [#allocation5], 16
    $region25: #{tpu_custom_call.1} parent=1 // pred_fallthru
      _
    %247 = sfence
    %248 = vsyncpa [#allocation3], 1
    %249 = vsyncpa [#allocation4], 1
    %250 = vsyncpa [#allocation5], 1

</llo_original>
